<compile_context>
chip_gen: v7x
topology: tpu7x:2x2x1
jax: 0.10.0
libtpu: 0.0.40
codegen_flags: <defaults>
</compile_context>

<pallas_src>
import math

import jax
import jax.numpy as jnp
from jax.experimental import pallas as pl
from jax.experimental.pallas import tpu as pltpu

# Small, module-consistent sizes.
B, L, H = 2, 8, 32            # batch, sequence, hidden
NH = 4                        # num_attention_heads
T = 16                        # num_att_tokens
D = H // NH                   # head dim
EPS = 1.1920928955078125e-07  # torch.finfo(torch.float32).eps (F.rms_norm default)

# MXU operand dtype (see header comment).
MXU_DTYPE = jnp.float32


def _mm_t(a, w):
    """a @ w.T with f32 accumulation; `w` stays in PyTorch (out, in) layout.

    Contracting on w's dim 1 avoids materialising transposed HxH weight copies
    in HBM before the kernel runs.
    """
    return jax.lax.dot_general(
        a.astype(MXU_DTYPE), w.astype(MXU_DTYPE),
        dimension_numbers=(((1,), (1,)), ((), ())),
        preferred_element_type=jnp.float32)


def _rms(t):
    """F.rms_norm over the hidden dim, no weight — float32 math."""
    return t * jax.lax.rsqrt(jnp.mean(t * t, axis=-1, keepdims=True) + EPS)


# ---------------------------------------------------------------------------
# Kernel 1: batch-independent K / V from the parameter tokens (runs ONCE).
# ---------------------------------------------------------------------------
def kv_kernel(pk_ref, pv_ref, wk_ref, wv_ref, k_ref, v_ref):
    k_ref[...] = _rms(_mm_t(pk_ref[...], wk_ref[...])).astype(k_ref.dtype)
    v_ref[...] = _mm_t(pv_ref[...], wv_ref[...]).astype(v_ref.dtype)


# ---------------------------------------------------------------------------
# Kernel 2: main attention, gridded over the flattened (B*L) token dim.
# ---------------------------------------------------------------------------
def make_tpa_kernel(num_heads, head_dim, scale):
    def tpa_kernel(x_ref, k_ref, v_ref, wq_ref, wo_ref, o_ref, a_scr):
        # q-projection + RMS; softmax scale folded into q once (not per head).
        q = _rms(_mm_t(x_ref[...], wq_ref[...])) * scale          # (TR, H) f32
        q = q.astype(MXU_DTYPE)
        k = k_ref[...]                                            # (T, H) resident
        v = v_ref[...]                                            # (T, H) resident

        # Static per-head loop.  Each head writes its (TR, D) result into the
        # concat scratch at lane offset h*D; ONE K=H matmul against Wo follows.
        # TODO(synk): with D, T < 128 these are sub-vreg lane slices — at real
        # shapes choose D / T lane-dense (multiples of 128) or head-batch.
        for h in range(num_heads):
            sl = slice(h * head_dim, (h + 1) * head_dim)
            s = jax.lax.dot_general(                              # (TR, T)
                q[:, sl], k[:, sl],
                dimension_numbers=(((1,), (1,)), ((), ())),
                preferred_element_type=jnp.float32)
            m = jnp.max(s, axis=-1, keepdims=True)
            e = jnp.exp(s - m)
            p = e * pl.reciprocal(jnp.sum(e, axis=-1, keepdims=True), approx=True)
            a_scr[:, sl] = jnp.dot(p.astype(MXU_DTYPE), v[:, sl],
                                   preferred_element_type=jnp.float32)

        # Single fused output projection: one (TR, H) x (H, H) MXU matmul.
        o_ref[...] = _mm_t(a_scr[...], wo_ref[...]).astype(o_ref.dtype)

    return tpa_kernel


def token_param_attention(x, pk, pv, w_q, w_k, w_v, w_o, *,
                          num_heads=NH, tile_rows=None):
    """x: (B, L, H); pk/pv: (1, T, H); weights in PyTorch (out, in) layout."""
    b, seq, hdim = x.shape
    n_tok = pk.shape[1]
    head_dim = hdim // num_heads
    rows = b * seq

    if tile_rows is None:
        tile_rows = min(256, rows)
    assert rows % tile_rows == 0, "flattened token count must tile evenly"

    x2d = x.reshape(rows, hdim)
    pk2d = pk.reshape(n_tok, hdim)
    pv2d = pv.reshape(n_tok, hdim)

    vmem_full = pl.BlockSpec(memory_space=pltpu.MemorySpace.VMEM)

    # ---- one-shot K / V from the parameter tokens (batch-independent) -----
    k2d, v2d = pl.pallas_call(
        kv_kernel,
        out_shape=(jax.ShapeDtypeStruct((n_tok, hdim), MXU_DTYPE),
                   jax.ShapeDtypeStruct((n_tok, hdim), MXU_DTYPE)),
        in_specs=[vmem_full] * 4,
        out_specs=(vmem_full, vmem_full),
    )(pk2d, pv2d, w_k, w_v)

    # ---- gridded attention over the token rows ----------------------------
    grid = (rows // tile_rows,)
    row_spec = pl.BlockSpec((tile_rows, hdim), lambda i: (i, 0))
    # Same block index every step -> stays resident in VMEM across the grid.
    resident = lambda shp: pl.BlockSpec(shp, lambda i: (0, 0))

    itemsize = jnp.dtype(x.dtype).itemsize
    cost = pl.CostEstimate(
        flops=4 * rows * hdim * hdim + 4 * rows * n_tok * hdim,
        transcendentals=num_heads * rows * n_tok,
        bytes_accessed=(2 * rows * hdim + 2 * hdim * hdim) * itemsize
                       + 2 * n_tok * hdim * jnp.dtype(MXU_DTYPE).itemsize)

    out2d = pl.pallas_call(
        make_tpa_kernel(num_heads, head_dim, 1.0 / math.sqrt(head_dim)),
        out_shape=jax.ShapeDtypeStruct((rows, hdim), x.dtype),
        grid_spec=pltpu.PrefetchScalarGridSpec(
            num_scalar_prefetch=0,
            grid=grid,
            in_specs=[row_spec,                     # x tile (double-buffered)
                      resident((n_tok, hdim)),      # K (already RMS-normed)
                      resident((n_tok, hdim)),      # V
                      resident((hdim, hdim)),       # Wq  (out, in) layout
                      resident((hdim, hdim))],      # Wo  (out, in) layout
            out_specs=row_spec,
            scratch_shapes=[pltpu.VMEM((tile_rows, hdim), jnp.float32)]),
        compiler_params=pltpu.CompilerParams(
            dimension_semantics=("parallel",)),
        cost_estimate=cost,
    )(x2d, k2d, v2d, w_q, w_o)

    return out2d.reshape(b, seq, hdim)


def reference(x, pk, pv, w_q, w_k, w_v, w_o):
    """Pure-JAX reference mirroring the PyTorch forward (attention_mask=None)."""
    b, seq, hdim = x.shape
    n_tok = pk.shape[1]
    nh, d = NH, hdim // NH

    q = x @ w_q.T                                        # (b, L, H)
    k = jnp.broadcast_to(pk @ w_k.T, (b, n_tok, hdim))   # (b, T, H)
    v = jnp.broadcast_to(pv @ w_v.T, (b, n_tok, hdim))

    q, k = _rms(q), _rms(k)

    qh = q.reshape(b, seq, nh, d).transpose(0, 2, 1, 3)
    kh = k.reshape(b, n_tok, nh, d).transpose(0, 2, 1, 3)
    vh = v.reshape(b, n_tok, nh, d).transpose(0, 2, 1, 3)

    scores = jnp.einsum('bhqd,bhkd->bhqk', qh, kh) / math.sqrt(d)
    p = jax.nn.softmax(scores, axis=-1)
    a = jnp.einsum('bhqk,bhkd->bhqd', p, vh)
    a = a.transpose(0, 2, 1, 3).reshape(b, seq, hdim)
    return a @ w_o.T


if __name__ == "__main__":
    key = jax.random.PRNGKey(0)
    kx, kpk, kpv, kq, kk, kvv, ko = jax.random.split(key, 7)

    x = jax.random.normal(kx, (B, L, H), dtype=jnp.float32)
    # Parameter tokens (module: torch.randn(1, T, H)).
    pk = jax.random.normal(kpk, (1, T, H), dtype=jnp.float32)
    pv = jax.random.normal(kpv, (1, T, H), dtype=jnp.float32)
    # Linear weights in PyTorch (out, in) layout, bias-free.
    w_q = jax.random.normal(kq, (H, H), dtype=jnp.float32) * (1.0 / math.sqrt(H))
    w_k = jax.random.normal(kk, (H, H), dtype=jnp.float32) * (1.0 / math.sqrt(H))
    w_v = jax.random.normal(kvv, (H, H), dtype=jnp.float32) * (1.0 / math.sqrt(H))
    w_o = jax.random.normal(ko, (H, H), dtype=jnp.float32) * (1.0 / math.sqrt(H))

    # tile_rows=8 exercises a 2-step grid at the toy size (B*L = 16).
    out = token_param_attention(x, pk, pv, w_q, w_k, w_v, w_o, tile_rows=8)
    out = jax.block_until_ready(out)

    ref = reference(x, pk, pv, w_q, w_k, w_v, w_o)
    assert out.shape == (B, L, H)
    # Tolerance accounts for the approximate EUP reciprocal in the softmax.
    err = float(jnp.max(jnp.abs(out - ref)))
    assert jnp.allclose(out, ref, rtol=5e-3, atol=5e-3), err
    print("KERNEL_OK")
</pallas_src>

<mosaic_0001>
module attributes {stable_mosaic.version = 11 : i64} {
  func.func @kv_kernel(%arg0: memref<16x32xf32, #tpu.memory_space<vmem>>, %arg1: memref<16x32xf32, #tpu.memory_space<vmem>>, %arg2: memref<32x32xf32, #tpu.memory_space<vmem>>, %arg3: memref<32x32xf32, #tpu.memory_space<vmem>>, %arg4: memref<16x32xf32, #tpu.memory_space<vmem>>, %arg5: memref<16x32xf32, #tpu.memory_space<vmem>>) attributes {dimension_semantics = [], scalar_prefetch = 0 : i64, scratch_operands = 0 : i64, tpu.core_type = #tpu.core_type<tc>} {
    %c0 = arith.constant 0 : index
    %c0_0 = arith.constant 0 : index
    %0 = vector.load %arg0[%c0, %c0_0] : memref<16x32xf32, #tpu.memory_space<vmem>>, vector<16x32xf32>
    %c0_1 = arith.constant 0 : index
    %c0_2 = arith.constant 0 : index
    %1 = vector.load %arg2[%c0_1, %c0_2] : memref<32x32xf32, #tpu.memory_space<vmem>>, vector<32x32xf32>
    %cst = arith.constant dense<0.000000e+00> : vector<16x32xf32>
    %2 = tpu.matmul %0, %1, %cst {dimension_numbers = #tpu.dot_dimension_numbers<[1], [1], [0], [0], [0, 0, 1, 0], [], []>} : vector<16x32xf32>, vector<32x32xf32>, vector<16x32xf32> -> vector<16x32xf32>
    %3 = arith.mulf %2, %2 : vector<16x32xf32>
    %cst_3 = arith.constant dense<0.000000e+00> : vector<16xf32>
    %4 = vector.multi_reduction <add>, %3, %cst_3 [1] : vector<16x32xf32> to vector<16xf32>
    %5 = vector.shape_cast %4 : vector<16xf32> to vector<16x1xf32>
    %cst_4 = arith.constant 3.200000e+01 : f32
    %6 = vector.broadcast %cst_4 : f32 to vector<16x1xf32>
    %7 = arith.divf %5, %6 : vector<16x1xf32>
    %cst_5 = arith.constant 1.1920929E-7 : f32
    %8 = vector.broadcast %cst_5 : f32 to vector<16x1xf32>
    %9 = arith.addf %7, %8 : vector<16x1xf32>
    %10 = math.rsqrt %9 : vector<16x1xf32>
    %11 = vector.broadcast %10 : vector<16x1xf32> to vector<16x32xf32>
    %12 = arith.mulf %2, %11 : vector<16x32xf32>
    %c0_6 = arith.constant 0 : index
    %c0_7 = arith.constant 0 : index
    %13 = vector.load %arg4[%c0_6, %c0_7] : memref<16x32xf32, #tpu.memory_space<vmem>>, vector<16x32xf32>
    tpu.vector_store %arg4[%c0_6, %c0_7], %12 {strides = array<i32>} : memref<16x32xf32, #tpu.memory_space<vmem>>, vector<16x32xf32>,
    %c0_8 = arith.constant 0 : index
    %c0_9 = arith.constant 0 : index
    %14 = vector.load %arg1[%c0_8, %c0_9] : memref<16x32xf32, #tpu.memory_space<vmem>>, vector<16x32xf32>
    %c0_10 = arith.constant 0 : index
    %c0_11 = arith.constant 0 : index
    %15 = vector.load %arg3[%c0_10, %c0_11] : memref<32x32xf32, #tpu.memory_space<vmem>>, vector<32x32xf32>
    %cst_12 = arith.constant dense<0.000000e+00> : vector<16x32xf32>
    %16 = tpu.matmul %14, %15, %cst_12 {dimension_numbers = #tpu.dot_dimension_numbers<[1], [1], [0], [0], [0, 0, 1, 0], [], []>} : vector<16x32xf32>, vector<32x32xf32>, vector<16x32xf32> -> vector<16x32xf32>
    %c0_13 = arith.constant 0 : index
    %c0_14 = arith.constant 0 : index
    %17 = vector.load %arg5[%c0_13, %c0_14] : memref<16x32xf32, #tpu.memory_space<vmem>>, vector<16x32xf32>
    tpu.vector_store %arg5[%c0_13, %c0_14], %16 {strides = array<i32>} : memref<16x32xf32, #tpu.memory_space<vmem>>, vector<16x32xf32>,
    return
  }
}

</mosaic_0001>

<llo_original>
// kernel: tpu_custom_call.1
$region0: #{tpu_custom_call.1}
  #allocation0 [shape = 'u32[]', space=smem, size = 0x4, offset = 0x4, fixed_abs, tag = 'smem constant byte address 0x4 - core index']
  #allocation1 [shape = 'u32[144,128]{1,0:T(1,128)}', space=vmem, size = 0x12000, scoped, tag = 'internal scratch']
  %s0 = inlined_call_operand.hbm [shape: f32[16,32], index: 0, kind: input, shape index: {}]
  %s1 = inlined_call_operand.hbm [shape: f32[16,32], index: 1, kind: input, shape index: {}]
  %s2 = inlined_call_operand.hbm [shape: f32[32,32], index: 2, kind: input, shape index: {}]
  %s3 = inlined_call_operand.hbm [shape: f32[32,32], index: 3, kind: input, shape index: {}]
  %s4 = inlined_call_operand.hbm [shape: f32[16,32], index: 4, kind: output, shape index: {0}]
  %s5 = inlined_call_operand.hbm [shape: f32[16,32], index: 5, kind: output, shape index: {1}]
  %6 = xla_tuple %s4, %s5
  %s7 = sld [smem:[#allocation0]]
  $region50: #{tpu_custom_call.1} parent=0
    _
  %s9 = ssub.s32 1, %s7
  %s10 = scalar_select 0, %s9, %s7
  $region1: #{tpu_custom_call.1} parent=0
    #allocation2 [shape = 'u8[8192]{0}', space=vmem, size = 0x2000, scoped, tag = 'input window, operand 0, single buffered']
    #allocation3 [shape = 's32[1]{0}', space=sflag, size = 0x4, scoped, tag = 'scoped memory for tpu_custom_call.1']
    #allocation4 [shape = 's32[1]{0}', space=sflag, size = 0x4, scoped, tag = 'scoped memory for tpu_custom_call.1']
    #allocation5 [shape = 'u8[8192]{0}', space=vmem, size = 0x2000, scoped, tag = 'input window, operand 1, single buffered']
    #allocation6 [shape = 's32[1]{0}', space=sflag, size = 0x4, scoped, tag = 'scoped memory for tpu_custom_call.1']
    #allocation7 [shape = 'u8[16384]{0}', space=vmem, size = 0x4000, scoped, tag = 'input window, operand 2, single buffered']
    #allocation8 [shape = 'u8[16384]{0}', space=vmem, size = 0x4000, scoped, tag = 'input window, operand 3, single buffered']
    #allocation9 [shape = 's32[1]{0}', space=sflag, size = 0x4, scoped, tag = 'scoped memory for tpu_custom_call.1']
    #allocation10 [shape = 'u8[8192]{0}', space=vmem, size = 0x2000, scoped, tag = 'output window, operand 0, single buffered']
    #allocation11 [shape = 'u8[8192]{0}', space=vmem, size = 0x2000, scoped, tag = 'output window, operand 1, single buffered']
    #allocation12 [shape = 's32[1]{0}', space=sflag, size = 0x4, scoped, tag = 'scoped memory for tpu_custom_call.1']
    %11 = vsyncpa [#allocation3], 0
    %12 = vsyncpa [#allocation6], 0
    %13 = vsyncpa [#allocation9], 0
    %14 = vsyncpa [#allocation4], 0
    %15 = vsyncpa [#allocation12], 0
    // Predicated region
    $region2: #{tpu_custom_call.1} parent=1 // pred_check
      _
    $region3: #{tpu_custom_call.1} parent=1 // pred_check_branch
      %17 = sbr.rel (0) target = $region5
    $region4: #{tpu_custom_call.1} parent=1 // pred_region
      %s19 = ssub.s32 256, 256
      %20 = vsyncadd [#allocation3], %s19
      %s21 = sshll.u32 [#allocation2], 4
      %s22 = int_to_ptr.vmem [resolvable:$true] %s21
      %27 = dma.hbm_to_vmem [thread:$0]  %s0, 256, %s22, [#allocation3], 128, 128, 8
    $region5: #{tpu_custom_call.1} parent=1 // pred_fallthru
      _
    // Predicated region
    $region6: #{tpu_custom_call.1} parent=1 // pred_check
      _
    $region7: #{tpu_custom_call.1} parent=1 // pred_check_branch
      %29 = sbr.rel (0) target = $region9
    $region8: #{tpu_custom_call.1} parent=1 // pred_region
      %s31 = ssub.s32 256, 256
      %32 = vsyncadd [#allocation6], %s31
      %s33 = sshll.u32 [#allocation5], 4
      %s34 = int_to_ptr.vmem [resolvable:$true] %s33
      %39 = dma.hbm_to_vmem [thread:$0]  %s1, 256, %s34, [#allocation6], 128, 128, 8
    $region9: #{tpu_custom_call.1} parent=1 // pred_fallthru
      _
    // Predicated region
    $region10: #{tpu_custom_call.1} parent=1 // pred_check
      _
    $region11: #{tpu_custom_call.1} parent=1 // pred_check_branch
      %41 = sbr.rel (0) target = $region13
    $region12: #{tpu_custom_call.1} parent=1 // pred_region
      %s43 = ssub.s32 512, 512
      %44 = vsyncadd [#allocation6], %s43
      %s45 = sshll.u32 [#allocation7], 4
      %s46 = int_to_ptr.vmem [resolvable:$true] %s45
      %51 = dma.hbm_to_vmem [thread:$0]  %s2, 512, %s46, [#allocation6], 128, 128, 8
    $region13: #{tpu_custom_call.1} parent=1 // pred_fallthru
      _
    // Predicated region
    $region14: #{tpu_custom_call.1} parent=1 // pred_check
      _
    $region15: #{tpu_custom_call.1} parent=1 // pred_check_branch
      %53 = sbr.rel (0) target = $region17
    $region16: #{tpu_custom_call.1} parent=1 // pred_region
      %s55 = ssub.s32 512, 512
      %56 = vsyncadd [#allocation9], %s55
      %s57 = sshll.u32 [#allocation8], 4
      %s58 = int_to_ptr.vmem [resolvable:$true] %s57
      %63 = dma.hbm_to_vmem [thread:$0]  %s3, 512, %s58, [#allocation9], 128, 128, 8
    $region17: #{tpu_custom_call.1} parent=1 // pred_fallthru
      _
    // Predicated region
    $region18: #{tpu_custom_call.1} parent=1 // pred_check
      _
    $region19: #{tpu_custom_call.1} parent=1 // pred_check_branch
      %65 = sbr.rel (0) target = $region21
    $region20: #{tpu_custom_call.1} parent=1 // pred_region
      %66 = dma.done [#allocation3], 256
    $region21: #{tpu_custom_call.1} parent=1 // pred_fallthru
      _
    // Predicated region
    $region22: #{tpu_custom_call.1} parent=1 // pred_check
      _
    $region23: #{tpu_custom_call.1} parent=1 // pred_check_branch
      %68 = sbr.rel (0) target = $region25
    $region24: #{tpu_custom_call.1} parent=1 // pred_region
      %69 = dma.done [#allocation6], 256
    $region25: #{tpu_custom_call.1} parent=1 // pred_fallthru
      _
    // Predicated region
    $region26: #{tpu_custom_call.1} parent=1 // pred_check
      _
    $region27: #{tpu_custom_call.1} parent=1 // pred_check_branch
      %71 = sbr.rel (0) target = $region29
    $region28: #{tpu_custom_call.1} parent=1 // pred_region
      %72 = dma.done [#allocation6], 512
    $region29: #{tpu_custom_call.1} parent=1 // pred_fallthru
      _
    // Predicated region
    $region30: #{tpu_custom_call.1} parent=1 // pred_check
      _
    $region31: #{tpu_custom_call.1} parent=1 // pred_check_branch
      %74 = sbr.rel (0) target = $region33
    $region32: #{tpu_custom_call.1} parent=1 // pred_region
      %75 = dma.done [#allocation9], 512
    $region33: #{tpu_custom_call.1} parent=1 // pred_fallthru
      _
    %v76 = vld [vmem:[#allocation2] sm:$0xff]
    %v77 = vld [vmem:[#allocation2 + $0x8] sm:$0xff]
    %v78 = vld [vmem:[#allocation7] sm:$0xff]
    %v79 = vld [vmem:[#allocation7 + $0x8] sm:$0xff]
    %v80 = vld [vmem:[#allocation7 + $0x10] sm:$0xff]
    %v81 = vld [vmem:[#allocation7 + $0x18] sm:$0xff]
    %vm82 = vcmask 261120
    %v84 = vsel %vm82, %v76, 0
    %v87 = vsel %vm82, %v77, 0
    %v90 = vsel %vm82, %v78, 0
    %v93 = vsel %vm82, %v79, 0
    %v96 = vsel %vm82, %v80, 0
    %v99 = vsel %vm82, %v81, 0
    %101 = vmatprep.subr.mxu0 0.0
    %102 = vmatpush1.xpose.msra.mxu0 %v90
    %103 = vmatprep.subr.mxu0 0.0
    %104 = vmatpush1.xpose.msra.mxu0 %v93
    %105 = vmatprep.subr.mxu0 0.0
    %106 = vmatpush1.xpose.msra.mxu0 %v96
    %107 = vmatprep.subr.mxu0 0.0
    %108 = vmatpush1.xpose.msra.mxu0 %v99
    %109 = vmatprep.subr.mxu0 0.0
    %110 = vmatpush1.xpose.msra.mxu0 0.0
    %111 = vmatprep.subr.mxu0 0.0
    %112 = vmatpush1.xpose.msra.mxu0 0.0
    %113 = vmatprep.subr.mxu0 0.0
    %114 = vmatpush1.xpose.msra.mxu0 0.0
    %115 = vmatprep.subr.mxu0 0.0
    %116 = vmatpush1.xpose.msra.mxu0 0.0
    %117 = vmatprep.subr.mxu0 0.0
    %118 = vmatpush1.xpose.msra.mxu0 0.0
    %119 = vmatprep.subr.mxu0 0.0
    %120 = vmatpush1.xpose.msra.mxu0 0.0
    %121 = vmatprep.subr.mxu0 0.0
    %122 = vmatpush1.xpose.msra.mxu0 0.0
    %123 = vmatprep.subr.mxu0 0.0
    %124 = vmatpush1.xpose.msra.mxu0 0.0
    %125 = vmatprep.subr.mxu0 0.0
    %126 = vmatpush1.xpose.msra.mxu0 0.0
    %127 = vmatprep.subr.mxu0 0.0
    %128 = vmatpush1.xpose.msra.mxu0 0.0
    %129 = vmatprep.subr.mxu0 0.0
    %130 = vmatpush1.xpose.msra.mxu0 0.0
    %131 = vmatprep.subr.mxu0 0.0
    %132 = vmatpush1.xpose.msra.mxu0 0.0
    %133 = vmatprep.subr.mxu0 0.0
    %134 = vmatpush1.xpose.msra.mxu0 0.0
    %135 = vmatprep.subr.mxu0 0.0
    %136 = vmatpush1.xpose.msra.mxu0 0.0
    %137 = vmatprep.subr.mxu0 0.0
    %138 = vmatpush1.xpose.msra.mxu0 0.0
    %139 = vmatprep.subr.mxu0 0.0
    %140 = vmatpush1.xpose.msra.mxu0 0.0
    %141 = vmatprep.subr.mxu0 0.0
    %142 = vmatpush1.xpose.msra.mxu0 0.0
    %143 = vmatprep.subr.mxu0 0.0
    %144 = vmatpush1.xpose.msra.mxu0 0.0
    %145 = vmatprep.subr.mxu0 0.0
    %146 = vmatpush1.xpose.msra.mxu0 0.0
    %147 = vmatprep.subr.mxu0 0.0
    %148 = vmatpush1.xpose.msra.mxu0 0.0
    %149 = vmatprep.subr.mxu0 0.0
    %150 = vmatpush1.xpose.msra.mxu0 0.0
    %151 = vmatprep.subr.mxu0 0.0
    %152 = vmatpush1.xpose.msra.mxu0 0.0
    %153 = vmatprep.subr.mxu0 0.0
    %154 = vmatpush1.xpose.msra.mxu0 0.0
    %155 = vmatprep.subr.mxu0 0.0
    %156 = vmatpush1.xpose.msra.mxu0 0.0
    %157 = vmatprep.subr.mxu0 0.0
    %158 = vmatpush1.xpose.msra.mxu0 0.0
    %159 = vmatprep.subr.mxu0 0.0
    %160 = vmatpush1.xpose.msra.mxu0 0.0
    %161 = vmatprep.subr.mxu0 0.0
    %162 = vmatpush1.xpose.msra.mxu0 0.0
    %163 = vmatprep.subr.mxu0 0.0
    %164 = vmatpush1.xpose.msra.mxu0 0.0
    %165 = vmatprep.mubr.f32.mxu0 0.0
    %166 = vmatmul.mubr.f32.gmra.mrb[0].mxu0 %v84
    %v167 = vpop.f32.mrb[0].mxu0
    %v168 = vadd.f32 0.0, %v167
    %v169 = vpop.f32.mrb[0].mxu0
    %170 = vmatprep.mubr.f32.mxu0 0.0
    %171 = vmatmul.mubr.f32.gmra.mrb[0].mxu0 %v87
    %v172 = vpop.f32.mrb[0].mxu0
    %v173 = vadd.f32 0.0, %v172
    %v174 = vpop.f32.mrb[0].mxu0
    %175 = vdwg.mxu0
    %v176 = vmul.f32 %v168, %v168
    %v177 = vmul.f32 %v173, %v173
    %v178 = vsel %vm82, %v176, 0.0
    %179 = vadd.xlane.f32.xlu0 %v178
    %v180 = vpop.xlane.xlu0 %179
    %v181 = vsel %vm82, %v177, 0.0
    %182 = vadd.xlane.f32.xlu0 %v181
    %v183 = vpop.xlane.xlu0 %182
    %v184 = vrcp.pop 32.0
    %v185 = vmul.f32 %v180, %v184
    %v186 = vmul.f32 %v183, %v184
    %v187 = vadd.f32 %v185, 1.1920929e-07
    %v188 = vadd.f32 %v186, 1.1920929e-07
    %v189 = vrsqrt.pop %v187
    %v190 = vrsqrt.pop %v188
    %v191 = vmul.f32 %v168, %v189
    %v192 = vmul.f32 %v173, %v190
    %193 = vst.msk [vmem:[#allocation10] sm:$0xff] %vm82, %v191
    %194 = vst.msk [vmem:[#allocation10 + $0x8] sm:$0xff] %vm82, %v192
    %v195 = vld [vmem:[#allocation5] sm:$0xff]
    %v196 = vld [vmem:[#allocation5 + $0x8] sm:$0xff]
    %v197 = vld [vmem:[#allocation8] sm:$0xff]
    %v198 = vld [vmem:[#allocation8 + $0x8] sm:$0xff]
    %v199 = vld [vmem:[#allocation8 + $0x10] sm:$0xff]
    %v200 = vld [vmem:[#allocation8 + $0x18] sm:$0xff]
    %v202 = vsel %vm82, %v195, 0
    %v205 = vsel %vm82, %v196, 0
    %v208 = vsel %vm82, %v197, 0
    %v211 = vsel %vm82, %v198, 0
    %v214 = vsel %vm82, %v199, 0
    %v217 = vsel %vm82, %v200, 0
    %219 = vmatprep.subr.mxu0 0.0
    %220 = vmatpush1.xpose.msra.mxu0 %v208
    %221 = vmatprep.subr.mxu0 0.0
    %222 = vmatpush1.xpose.msra.mxu0 %v211
    %223 = vmatprep.subr.mxu0 0.0
    %224 = vmatpush1.xpose.msra.mxu0 %v214
    %225 = vmatprep.subr.mxu0 0.0
    %226 = vmatpush1.xpose.msra.mxu0 %v217
    %227 = vmatprep.subr.mxu0 0.0
    %228 = vmatpush1.xpose.msra.mxu0 0.0
    %229 = vmatprep.subr.mxu0 0.0
    %230 = vmatpush1.xpose.msra.mxu0 0.0
    %231 = vmatprep.subr.mxu0 0.0
    %232 = vmatpush1.xpose.msra.mxu0 0.0
    %233 = vmatprep.subr.mxu0 0.0
    %234 = vmatpush1.xpose.msra.mxu0 0.0
    %235 = vmatprep.subr.mxu0 0.0
    %236 = vmatpush1.xpose.msra.mxu0 0.0
    %237 = vmatprep.subr.mxu0 0.0
    %238 = vmatpush1.xpose.msra.mxu0 0.0
    %239 = vmatprep.subr.mxu0 0.0
    %240 = vmatpush1.xpose.msra.mxu0 0.0
    %241 = vmatprep.subr.mxu0 0.0
    %242 = vmatpush1.xpose.msra.mxu0 0.0
    %243 = vmatprep.subr.mxu0 0.0
    %244 = vmatpush1.xpose.msra.mxu0 0.0
    %245 = vmatprep.subr.mxu0 0.0
    %246 = vmatpush1.xpose.msra.mxu0 0.0
    %247 = vmatprep.subr.mxu0 0.0
    %248 = vmatpush1.xpose.msra.mxu0 0.0
    %249 = vmatprep.subr.mxu0 0.0
    %250 = vmatpush1.xpose.msra.mxu0 0.0
    %251 = vmatprep.subr.mxu0 0.0
    %252 = vmatpush1.xpose.msra.mxu0 0.0
    %253 = vmatprep.subr.mxu0 0.0
    %254 = vmatpush1.xpose.msra.mxu0 0.0
    %255 = vmatprep.subr.mxu0 0.0
    %256 = vmatpush1.xpose.msra.mxu0 0.0
    %257 = vmatprep.subr.mxu0 0.0
    %258 = vmatpush1.xpose.msra.mxu0 0.0
    %259 = vmatprep.subr.mxu0 0.0
    %260 = vmatpush1.xpose.msra.mxu0 0.0
    %261 = vmatprep.subr.mxu0 0.0
    %262 = vmatpush1.xpose.msra.mxu0 0.0
    %263 = vmatprep.subr.mxu0 0.0
    %264 = vmatpush1.xpose.msra.mxu0 0.0
    %265 = vmatprep.subr.mxu0 0.0
    %266 = vmatpush1.xpose.msra.mxu0 0.0
    %267 = vmatprep.subr.mxu0 0.0
    %268 = vmatpush1.xpose.msra.mxu0 0.0
    %269 = vmatprep.subr.mxu0 0.0
    %270 = vmatpush1.xpose.msra.mxu0 0.0
    %271 = vmatprep.subr.mxu0 0.0
    %272 = vmatpush1.xpose.msra.mxu0 0.0
    %273 = vmatprep.subr.mxu0 0.0
    %274 = vmatpush1.xpose.msra.mxu0 0.0
    %275 = vmatprep.subr.mxu0 0.0
    %276 = vmatpush1.xpose.msra.mxu0 0.0
    %277 = vmatprep.subr.mxu0 0.0
    %278 = vmatpush1.xpose.msra.mxu0 0.0
    %279 = vmatprep.subr.mxu0 0.0
    %280 = vmatpush1.xpose.msra.mxu0 0.0
    %281 = vmatprep.subr.mxu0 0.0
    %282 = vmatpush1.xpose.msra.mxu0 0.0
    %283 = vmatprep.mubr.f32.mxu0 0.0
    %284 = vmatmul.mubr.f32.gmra.mrb[0].mxu0 %v202
    %v285 = vpop.f32.mrb[0].mxu0
    %v286 = vadd.f32 0.0, %v285
    %v287 = vpop.f32.mrb[0].mxu0
    %288 = vmatprep.mubr.f32.mxu0 0.0
    %289 = vmatmul.mubr.f32.gmra.mrb[0].mxu0 %v205
    %v290 = vpop.f32.mrb[0].mxu0
    %v291 = vadd.f32 0.0, %v290
    %v292 = vpop.f32.mrb[0].mxu0
    %293 = vdwg.mxu0
    %294 = vst.msk [vmem:[#allocation11] sm:$0xff] %vm82, %v286
    %295 = vst.msk [vmem:[#allocation11 + $0x8] sm:$0xff] %vm82, %v291
    // Predicated region
    $region34: #{tpu_custom_call.1} parent=1 // pred_check
      _
    $region35: #{tpu_custom_call.1} parent=1 // pred_check_branch
      %297 = sbr.rel (0) target = $region37
    $region36: #{tpu_custom_call.1} parent=1 // pred_region
      %s299 = ssub.s32 256, 256
      %300 = vsyncadd [#allocation4], %s299
      %s301 = sshll.u32 [#allocation10], 4
      %s302 = int_to_ptr.vmem [resolvable:$true] %s301
      %307 = dma.vmem_to_hbm [thread:$0]  %s302, 256, %s4, [#allocation4], 128, 128, 8
    $region37: #{tpu_custom_call.1} parent=1 // pred_fallthru
      _
    // Predicated region
    $region38: #{tpu_custom_call.1} parent=1 // pred_check
      _
    $region39: #{tpu_custom_call.1} parent=1 // pred_check_branch
      %309 = sbr.rel (0) target = $region41
    $region40: #{tpu_custom_call.1} parent=1 // pred_region
      %s311 = ssub.s32 256, 256
      %312 = vsyncadd [#allocation12], %s311
      %s313 = sshll.u32 [#allocation11], 4
      %s314 = int_to_ptr.vmem [resolvable:$true] %s313
      %319 = dma.vmem_to_hbm [thread:$0]  %s314, 256, %s5, [#allocation12], 128, 128, 8
    $region41: #{tpu_custom_call.1} parent=1 // pred_fallthru
      _
    // Predicated region
    $region42: #{tpu_custom_call.1} parent=1 // pred_check
      _
    $region43: #{tpu_custom_call.1} parent=1 // pred_check_branch
      %321 = sbr.rel (0) target = $region45
    $region44: #{tpu_custom_call.1} parent=1 // pred_region
      %322 = dma.done [#allocation4], 256
    $region45: #{tpu_custom_call.1} parent=1 // pred_fallthru
      _
    // Predicated region
    $region46: #{tpu_custom_call.1} parent=1 // pred_check
      _
    $region47: #{tpu_custom_call.1} parent=1 // pred_check_branch
      %324 = sbr.rel (0) target = $region49
    $region48: #{tpu_custom_call.1} parent=1 // pred_region
      %325 = dma.done [#allocation12], 256
    $region49: #{tpu_custom_call.1} parent=1 // pred_fallthru
      _
    %326 = vsyncpa [#allocation3], 1
    %327 = vsyncpa [#allocation6], 1
    %328 = vsyncpa [#allocation9], 1
    %329 = vsyncpa [#allocation4], 1
    %330 = vsyncpa [#allocation12], 1

</llo_original>
